<compile_context>
chip_gen: v7x
topology: tpu7x:2x2x1
jax: 0.10.0
libtpu: 0.0.40
codegen_flags: <defaults>
</compile_context>

<pallas_src>
import jax
import jax.numpy as jnp
from jax.experimental import pallas as pl
from jax.experimental.pallas import tpu as pltpu


def _round_up(x, m):
    return (x + m - 1) // m * m


# ---------------- Pallas kernels (hot path) ----------------

def _dense_kernel(x_ref, w_ref, b_ref, o_ref):
    # x: (tm, M), w: (M, tn), b: (1, tn), o: (tm, tn)
    acc = jnp.dot(x_ref[...], w_ref[...], preferred_element_type=jnp.float32)
    o_ref[...] = (acc + b_ref[...].astype(jnp.float32)).astype(o_ref.dtype)


def _grouped_kernel(x_ref, w_ref, b_ref, o_ref):
    # x: (B, Gb, M), w: (Gb, M, Np), b: (Gb, Np), o: (B, Gb, Np)
    # Gb groups per grid step; small statically-unrolled loop keeps the MXU
    # fed and avoids any in-kernel layout transpose of the batched operands.
    Gb = w_ref.shape[0]
    for g in range(Gb):
        acc = jnp.dot(x_ref[:, g, :], w_ref[g],
                      preferred_element_type=jnp.float32)
        acc = acc + b_ref[g:g + 1, :].astype(jnp.float32)
        o_ref[:, g, :] = acc.astype(o_ref.dtype)


# ---------------- groups == 1 path ----------------

def _dense_forward(x_cf, W, bias):
    B, C, M = x_cf.shape
    N = W.shape[1]
    dtype = x_cf.dtype
    itemsize = jnp.dtype(dtype).itemsize

    R = B * C
    N_pad = _round_up(N, 128)

    # N tile: lane-dense multiple of 128 that divides N_pad.
    if N_pad <= 512:
        tn = N_pad
    elif N_pad % 512 == 0:
        tn = 512
    elif N_pad % 256 == 0:
        tn = 256
    else:
        tn = 128

    # Row tile: target 512 rows; shrink to fit a conservative VMEM budget
    # (double-buffered blocks must stay well under v7x's 32 MiB scoped VMEM).
    tm = 512 if R > 512 else _round_up(max(R, 1), 8)
    budget = 24 * 1024 * 1024

    def blk_bytes(tm_, tn_):
        return 2 * (tm_ * M + M * tn_ + tn_ + tm_ * tn_) * itemsize

    while blk_bytes(tm, tn) > budget and tm > 8:
        tm = max(8, (tm // 2) // 8 * 8)
    while (blk_bytes(tm, tn) > budget and tn > 128
           and tn % 2 == 0 and N_pad % (tn // 2) == 0):
        tn //= 2
    # TODO(synk): very large M (cin) would additionally need K tiling with an
    # accumulator scratch; not needed at these shapes.

    R_pad = _round_up(R, tm)

    x2 = x_cf.reshape(R, M)
    if R_pad != R:
        x2 = jnp.pad(x2, ((0, R_pad - R), (0, 0)))
    Wp = W if N_pad == N else jnp.pad(W, ((0, 0), (0, N_pad - N)))
    bp = bias.reshape(1, N).astype(dtype)
    if N_pad != N:
        bp = jnp.pad(bp, ((0, 0), (0, N_pad - N)))

    grid = (R_pad // tm, N_pad // tn)
    cost = pl.CostEstimate(
        flops=2 * R_pad * M * N_pad,
        transcendentals=0,
        bytes_accessed=(R_pad * M + M * N_pad + N_pad + R_pad * N_pad) * itemsize,
    )
    vmem_limit = int(min(48 * 1024 * 1024,
                         max(32 * 1024 * 1024, 3 * blk_bytes(tm, tn))))

    out2 = pl.pallas_call(
        _dense_kernel,
        out_shape=jax.ShapeDtypeStruct((R_pad, N_pad), dtype),
        grid=grid,
        in_specs=[
            pl.BlockSpec((tm, M), lambda i, j: (i, 0)),
            pl.BlockSpec((M, tn), lambda i, j: (0, j)),
            pl.BlockSpec((1, tn), lambda i, j: (0, j)),
        ],
        out_specs=pl.BlockSpec((tm, tn), lambda i, j: (i, j)),
        compiler_params=pltpu.CompilerParams(
            dimension_semantics=("parallel", "parallel"),
            vmem_limit_bytes=vmem_limit,
        ),
        cost_estimate=cost,
    )(x2, Wp, bp)

    return out2[:R, :N].reshape(B, C, N)


# ---------------- groups > 1 path ----------------

def _grouped_forward(x_cf, W, bias):
    B, G, M = x_cf.shape
    N = W.shape[2]
    dtype = x_cf.dtype
    itemsize = jnp.dtype(dtype).itemsize

    N_pad = _round_up(N, 128)
    Wp = W if N_pad == N else jnp.pad(W, ((0, 0), (0, 0), (0, N_pad - N)))
    bp = bias.reshape(G, N).astype(dtype)
    if N_pad != N:
        bp = jnp.pad(bp, ((0, 0), (0, N_pad - N)))

    # Groups per grid step. Gb must be a multiple of 8 or equal to G so the
    # (.., Gb, ..) second-to-last block dims stay layout-legal.
    if G % 8 != 0:
        Gb = G
    else:
        Gb = 8
        per_group = (B * M + M * N_pad + N_pad + B * N_pad) * itemsize
        while (Gb * 2 <= G and G % (Gb * 2) == 0
               and 2 * (Gb * 2) * per_group < 16 * 1024 * 1024):
            Gb *= 2

    grid = (G // Gb,)
    blk_bytes = 2 * Gb * (B * M + M * N_pad + N_pad + B * N_pad) * itemsize
    cost = pl.CostEstimate(
        flops=2 * B * G * M * N_pad,
        transcendentals=0,
        bytes_accessed=(B * G * M + G * M * N_pad + G * N_pad
                        + B * G * N_pad) * itemsize,
    )
    vmem_limit = int(min(48 * 1024 * 1024,
                         max(32 * 1024 * 1024, 3 * blk_bytes)))

    outp = pl.pallas_call(
        _grouped_kernel,
        out_shape=jax.ShapeDtypeStruct((B, G, N_pad), dtype),
        grid=grid,
        in_specs=[
            pl.BlockSpec((B, Gb, M), lambda g: (0, g, 0)),      # native layout
            pl.BlockSpec((Gb, M, N_pad), lambda g: (g, 0, 0)),
            pl.BlockSpec((Gb, N_pad), lambda g: (g, 0)),
        ],
        out_specs=pl.BlockSpec((B, Gb, N_pad), lambda g: (0, g, 0)),
        compiler_params=pltpu.CompilerParams(
            dimension_semantics=("parallel",),
            vmem_limit_bytes=vmem_limit,
        ),
        cost_estimate=cost,
    )(x_cf, Wp, bp)

    return outp[:, :, :N]


# ---------------- wrapper (module semantics) ----------------

def conv1d1x1(x, W, bias, groups, cformat='channel-first'):
    """Forward pass of Conv1d1x1 (matches the torch module's einsums)."""
    if bias is None:
        bias = (jnp.zeros((1, W.shape[-1]), x.dtype) if groups == 1
                else jnp.zeros((groups, W.shape[-1]), x.dtype))
    # TODO(synk): channel-last is handled with wrapper transposes (extra HBM
    # passes); a transpose-free channel-last kernel (W^T on the other operand)
    # is possible but not implemented here.
    x_cf = jnp.transpose(x, (0, 2, 1)) if cformat == 'channel-last' else x
    if groups == 1:
        out = _dense_forward(x_cf, W, bias)
    else:
        out = _grouped_forward(x_cf, W, bias)
    if cformat == 'channel-last':
        out = jnp.transpose(out, (0, 2, 1))
    return out


# ---------------- reference (pure JAX) ----------------

def conv1d1x1_ref(x, W, bias, groups, cformat='channel-first'):
    if groups == 1:
        if cformat == 'channel-first':
            return jnp.einsum('bcm,mn->bcn', x, W) + bias
        return jnp.einsum('bmc,mn->bnc', x, W) + bias.T
    if cformat == 'channel-first':
        return jnp.einsum('bcm,cmn->bcn', x, W) + bias
    return jnp.einsum('bmc,cmn->bnc', x, W) + bias.T


if __name__ == "__main__":
    key = jax.random.PRNGKey(0)
    k1, k2, k3, k4 = jax.random.split(key, 4)

    B, C, cin, cout, groups = 2, 8, 16, 32, 4

    # ---- groups == 1 (W ~ randn(cin, cout), bias zeros(1, cout)) ----
    W1 = jax.random.normal(k1, (cin, cout), dtype=jnp.float32)
    b1 = jnp.zeros((1, cout), dtype=jnp.float32)
    x1 = jax.random.normal(k2, (B, C, cin), dtype=jnp.float32)   # (b, c, m)

    out1 = jax.block_until_ready(conv1d1x1(x1, W1, b1, groups=1,
                                           cformat='channel-first'))
    ref1 = conv1d1x1_ref(x1, W1, b1, groups=1, cformat='channel-first')
    assert out1.shape == (B, C, cout)
    assert jnp.allclose(out1, ref1, rtol=2e-2, atol=2e-2)

    out1_cl = jax.block_until_ready(
        conv1d1x1(jnp.transpose(x1, (0, 2, 1)), W1, b1, groups=1,
                  cformat='channel-last'))
    ref1_cl = conv1d1x1_ref(jnp.transpose(x1, (0, 2, 1)), W1, b1, groups=1,
                            cformat='channel-last')
    assert jnp.allclose(out1_cl, ref1_cl, rtol=2e-2, atol=2e-2)

    # ---- grouped (W ~ randn(groups, cin, cout), bias zeros(groups, cout)) ----
    Wg = jax.random.normal(k3, (groups, cin, cout), dtype=jnp.float32)
    bg = jnp.zeros((groups, cout), dtype=jnp.float32)
    xg = jax.random.normal(k4, (B, groups, cin), dtype=jnp.float32)  # (b, c=g, m)

    outg = jax.block_until_ready(conv1d1x1(xg, Wg, bg, groups=groups,
                                           cformat='channel-first'))
    refg = conv1d1x1_ref(xg, Wg, bg, groups=groups, cformat='channel-first')
    assert outg.shape == (B, groups, cout)
    assert jnp.allclose(outg, refg, rtol=2e-2, atol=2e-2)

    outg_cl = jax.block_until_ready(
        conv1d1x1(jnp.transpose(xg, (0, 2, 1)), Wg, bg, groups=groups,
                  cformat='channel-last'))
    refg_cl = conv1d1x1_ref(jnp.transpose(xg, (0, 2, 1)), Wg, bg,
                            groups=groups, cformat='channel-last')
    assert jnp.allclose(outg_cl, refg_cl, rtol=2e-2, atol=2e-2)

    print("KERNEL_OK")
</pallas_src>

<mosaic_0001>
module attributes {stable_mosaic.version = 11 : i64} {
  func.func @_dense_kernel(%arg0: i32, %arg1: i32, %arg2: memref<16x16xf32, #tpu.memory_space<vmem>>, %arg3: memref<16x128xf32, #tpu.memory_space<vmem>>, %arg4: memref<1x128xf32, #tpu.memory_space<vmem>>, %arg5: memref<16x128xf32, #tpu.memory_space<vmem>>) attributes {dimension_semantics = [#tpu.dimension_semantics<parallel>, #tpu.dimension_semantics<parallel>], iteration_bounds = array<i64: 1, 1>, scalar_prefetch = 0 : i64, scratch_operands = 0 : i64, tpu.core_type = #tpu.core_type<tc>, window_params = [{transform_indices = @transform_0, window_bounds = array<i64: 16, 16>}, {transform_indices = @transform_1, window_bounds = array<i64: 16, 128>}, {transform_indices = @transform_2, window_bounds = array<i64: 1, 128>}, {transform_indices = @transform_3, window_bounds = array<i64: 16, 128>}]} {
    %c0 = arith.constant 0 : index
    %c0_0 = arith.constant 0 : index
    %0 = vector.load %arg2[%c0, %c0_0] : memref<16x16xf32, #tpu.memory_space<vmem>>, vector<16x16xf32>
    %c0_1 = arith.constant 0 : index
    %c0_2 = arith.constant 0 : index
    %1 = vector.load %arg3[%c0_1, %c0_2] : memref<16x128xf32, #tpu.memory_space<vmem>>, vector<16x128xf32>
    %cst = arith.constant dense<0.000000e+00> : vector<16x128xf32>
    %2 = tpu.matmul %0, %1, %cst {dimension_numbers = #tpu.dot_dimension_numbers<[1], [0], [0], [1], [0, 0, 1, 1], [], []>} : vector<16x16xf32>, vector<16x128xf32>, vector<16x128xf32> -> vector<16x128xf32>
    %c0_3 = arith.constant 0 : index
    %c0_4 = arith.constant 0 : index
    %3 = vector.load %arg4[%c0_3, %c0_4] : memref<1x128xf32, #tpu.memory_space<vmem>>, vector<1x128xf32>
    %4 = vector.broadcast %3 : vector<1x128xf32> to vector<16x128xf32>
    %5 = arith.addf %2, %4 : vector<16x128xf32>
    %c0_5 = arith.constant 0 : index
    %c0_6 = arith.constant 0 : index
    %6 = vector.load %arg5[%c0_5, %c0_6] : memref<16x128xf32, #tpu.memory_space<vmem>>, vector<16x128xf32>
    tpu.vector_store %arg5[%c0_5, %c0_6], %5 {strides = array<i32>} : memref<16x128xf32, #tpu.memory_space<vmem>>, vector<16x128xf32>,
    return
  }
  func.func @transform_0(%arg0: i32, %arg1: i32) -> (i32, i32) {
    %c0_i32 = arith.constant 0 : i32
    %c0_i32_0 = arith.constant 0 : i32
    return %arg0, %c0_i32 : i32, i32
  }
  func.func @transform_1(%arg0: i32, %arg1: i32) -> (i32, i32) {
    %c0_i32 = arith.constant 0 : i32
    %c0_i32_0 = arith.constant 0 : i32
    return %c0_i32, %arg1 : i32, i32
  }
  func.func @transform_2(%arg0: i32, %arg1: i32) -> (i32, i32) {
    %c0_i32 = arith.constant 0 : i32
    %c0_i32_0 = arith.constant 0 : i32
    return %c0_i32, %arg1 : i32, i32
  }
  func.func @transform_3(%arg0: i32, %arg1: i32) -> (i32, i32) {
    %c0_i32 = arith.constant 0 : i32
    return %arg0, %arg1 : i32, i32
  }
}

</mosaic_0001>

<llo_original>
// kernel: tpu_custom_call.1
$region0: #{tpu_custom_call.1}
  #allocation0 [shape = 'u32[]', space=smem, size = 0x4, offset = 0x4, fixed_abs, tag = 'smem constant byte address 0x4 - core index']
  #allocation1 [shape = 'u32[144,128]{1,0:T(1,128)}', space=vmem, size = 0x12000, scoped, tag = 'internal scratch']
  %s0 = inlined_call_operand.hbm [shape: f32[16,16], index: 0, kind: input, shape index: {}]
  %s1 = inlined_call_operand.hbm [shape: f32[16,128], index: 1, kind: input, shape index: {}]
  %s2 = inlined_call_operand.vmem [shape: f32[1,128], index: 2, kind: input, shape index: {}]
  %s3 = inlined_call_operand.hbm [shape: f32[16,128], index: 3, kind: output, shape index: {}]
  %s4 = sld [smem:[#allocation0]]
  $region30: #{tpu_custom_call.1} parent=0
    _
  %s6 = ssub.s32 1, %s4
  %s7 = scalar_select 0, %s6, %s4
  $region1: #{tpu_custom_call.1} parent=0
    #allocation2 [shape = 'u8[8192]{0}', space=vmem, size = 0x2000, scoped, tag = 'input window, operand 0, single buffered']
    #allocation3 [shape = 's32[1]{0}', space=sflag, size = 0x4, scoped, tag = 'scoped memory for tpu_custom_call.1']
    #allocation4 [shape = 's32[1]{0}', space=sflag, size = 0x4, scoped, tag = 'scoped memory for tpu_custom_call.1']
    #allocation5 [shape = 'u8[8192]{0}', space=vmem, size = 0x2000, scoped, tag = 'input window, operand 1, single buffered']
    #allocation6 [shape = 's32[1]{0}', space=sflag, size = 0x4, scoped, tag = 'scoped memory for tpu_custom_call.1']
    #allocation7 [shape = 'u8[8192]{0}', space=vmem, size = 0x2000, scoped, tag = 'output window, operand 0, single buffered']
    %8 = vsyncpa [#allocation3], 0
    %9 = vsyncpa [#allocation6], 0
    %10 = vsyncpa [#allocation4], 0
    // Predicated region
    $region2: #{tpu_custom_call.1} parent=1 // pred_check
      _
    $region3: #{tpu_custom_call.1} parent=1 // pred_check_branch
      %12 = sbr.rel (0) target = $region5
    $region4: #{tpu_custom_call.1} parent=1 // pred_region
      %s14 = ssub.s32 256, 256
      %15 = vsyncadd [#allocation3], %s14
      %s16 = sshll.u32 [#allocation2], 4
      %s17 = int_to_ptr.vmem [resolvable:$true] %s16
      %22 = dma.hbm_to_vmem [thread:$0]  %s0, 256, %s17, [#allocation3], 128, 128, 8
    $region5: #{tpu_custom_call.1} parent=1 // pred_fallthru
      _
    // Predicated region
    $region6: #{tpu_custom_call.1} parent=1 // pred_check
      _
    $region7: #{tpu_custom_call.1} parent=1 // pred_check_branch
      %24 = sbr.rel (0) target = $region9
    $region8: #{tpu_custom_call.1} parent=1 // pred_region
      %s26 = ssub.s32 256, 256
      %27 = vsyncadd [#allocation6], %s26
      %s28 = sshll.u32 [#allocation5], 4
      %s29 = int_to_ptr.vmem [resolvable:$true] %s28
      %34 = dma.hbm_to_vmem [thread:$0]  %s1, 256, %s29, [#allocation6], 128, 128, 8
    $region9: #{tpu_custom_call.1} parent=1 // pred_fallthru
      _
    // Predicated region
    $region10: #{tpu_custom_call.1} parent=1 // pred_check
      _
    $region11: #{tpu_custom_call.1} parent=1 // pred_check_branch
      %36 = sbr.rel (0) target = $region13
    $region12: #{tpu_custom_call.1} parent=1 // pred_region
      _
    $region13: #{tpu_custom_call.1} parent=1 // pred_fallthru
      _
    // Predicated region
    $region14: #{tpu_custom_call.1} parent=1 // pred_check
      _
    $region15: #{tpu_custom_call.1} parent=1 // pred_check_branch
      %38 = sbr.rel (0) target = $region17
    $region16: #{tpu_custom_call.1} parent=1 // pred_region
      %39 = dma.done [#allocation3], 256
    $region17: #{tpu_custom_call.1} parent=1 // pred_fallthru
      _
    // Predicated region
    $region18: #{tpu_custom_call.1} parent=1 // pred_check
      _
    $region19: #{tpu_custom_call.1} parent=1 // pred_check_branch
      %41 = sbr.rel (0) target = $region21
    $region20: #{tpu_custom_call.1} parent=1 // pred_region
      %42 = dma.done [#allocation6], 256
    $region21: #{tpu_custom_call.1} parent=1 // pred_fallthru
      _
    %v43 = vld [vmem:[#allocation2] sm:$0xff]
    %v44 = vld [vmem:[#allocation2 + $0x8] sm:$0xff]
    %v45 = vld [vmem:[#allocation5] sm:$0xff]
    %v46 = vld [vmem:[#allocation5 + $0x8] sm:$0xff]
    %v47 = vld [vmem:[%s2] sm:$0x1]
    %v49 = vlaneseq
    %v50 = vshrl.u32 %v49, 7
    %v51 = vsub.s32 0, %v50
    %v52 = vrot.slane %v47, %v51
    %vm54 = vcmask 130048
    %v56 = vsel %vm54, %v43, 0
    %v59 = vsel %vm54, %v44, 0
    %61 = vmatprep.subr.mxu0 0.0
    %62 = vmatpush1.msra.mxu0 %v45
    %63 = vmatprep.subr.mxu0 0.0
    %64 = vmatpush1.msra.mxu0 %v46
    %65 = vmatprep.subr.mxu0 0.0
    %66 = vmatpush1.msra.mxu0 0.0
    %67 = vmatprep.subr.mxu0 0.0
    %68 = vmatpush1.msra.mxu0 0.0
    %69 = vmatprep.subr.mxu0 0.0
    %70 = vmatpush1.msra.mxu0 0.0
    %71 = vmatprep.subr.mxu0 0.0
    %72 = vmatpush1.msra.mxu0 0.0
    %73 = vmatprep.subr.mxu0 0.0
    %74 = vmatpush1.msra.mxu0 0.0
    %75 = vmatprep.subr.mxu0 0.0
    %76 = vmatpush1.msra.mxu0 0.0
    %77 = vmatprep.subr.mxu0 0.0
    %78 = vmatpush1.msra.mxu0 0.0
    %79 = vmatprep.subr.mxu0 0.0
    %80 = vmatpush1.msra.mxu0 0.0
    %81 = vmatprep.subr.mxu0 0.0
    %82 = vmatpush1.msra.mxu0 0.0
    %83 = vmatprep.subr.mxu0 0.0
    %84 = vmatpush1.msra.mxu0 0.0
    %85 = vmatprep.subr.mxu0 0.0
    %86 = vmatpush1.msra.mxu0 0.0
    %87 = vmatprep.subr.mxu0 0.0
    %88 = vmatpush1.msra.mxu0 0.0
    %89 = vmatprep.subr.mxu0 0.0
    %90 = vmatpush1.msra.mxu0 0.0
    %91 = vmatprep.subr.mxu0 0.0
    %92 = vmatpush1.msra.mxu0 0.0
    %93 = vmatprep.subr.mxu0 0.0
    %94 = vmatpush1.msra.mxu0 0.0
    %95 = vmatprep.subr.mxu0 0.0
    %96 = vmatpush1.msra.mxu0 0.0
    %97 = vmatprep.subr.mxu0 0.0
    %98 = vmatpush1.msra.mxu0 0.0
    %99 = vmatprep.subr.mxu0 0.0
    %100 = vmatpush1.msra.mxu0 0.0
    %101 = vmatprep.subr.mxu0 0.0
    %102 = vmatpush1.msra.mxu0 0.0
    %103 = vmatprep.subr.mxu0 0.0
    %104 = vmatpush1.msra.mxu0 0.0
    %105 = vmatprep.subr.mxu0 0.0
    %106 = vmatpush1.msra.mxu0 0.0
    %107 = vmatprep.subr.mxu0 0.0
    %108 = vmatpush1.msra.mxu0 0.0
    %109 = vmatprep.subr.mxu0 0.0
    %110 = vmatpush1.msra.mxu0 0.0
    %111 = vmatprep.subr.mxu0 0.0
    %112 = vmatpush1.msra.mxu0 0.0
    %113 = vmatprep.subr.mxu0 0.0
    %114 = vmatpush1.msra.mxu0 0.0
    %115 = vmatprep.subr.mxu0 0.0
    %116 = vmatpush1.msra.mxu0 0.0
    %117 = vmatprep.subr.mxu0 0.0
    %118 = vmatpush1.msra.mxu0 0.0
    %119 = vmatprep.subr.mxu0 0.0
    %120 = vmatpush1.msra.mxu0 0.0
    %121 = vmatprep.subr.mxu0 0.0
    %122 = vmatpush1.msra.mxu0 0.0
    %123 = vmatprep.subr.mxu0 0.0
    %124 = vmatpush1.msra.mxu0 0.0
    %125 = vmatprep.mubr.f32.mxu0 0.0
    %126 = vmatmul.mubr.f32.gmra.mrb[0].mxu0 %v56
    %v127 = vpop.f32.mrb[0].mxu0
    %v128 = vadd.f32 %v52, %v127
    %v129 = vpop.f32.mrb[0].mxu0
    %130 = vmatprep.mubr.f32.mxu0 0.0
    %131 = vmatmul.mubr.f32.gmra.mrb[0].mxu0 %v59
    %v132 = vpop.f32.mrb[0].mxu0
    %v133 = vadd.f32 %v52, %v132
    %v134 = vpop.f32.mrb[0].mxu0
    %135 = vdwg.mxu0
    %136 = vst [vmem:[#allocation7] sm:$0xff] %v128
    %137 = vst [vmem:[#allocation7 + $0x8] sm:$0xff] %v133
    // Predicated region
    $region22: #{tpu_custom_call.1} parent=1 // pred_check
      _
    $region23: #{tpu_custom_call.1} parent=1 // pred_check_branch
      %139 = sbr.rel (0) target = $region25
    $region24: #{tpu_custom_call.1} parent=1 // pred_region
      %s141 = ssub.s32 256, 256
      %142 = vsyncadd [#allocation4], %s141
      %s143 = sshll.u32 [#allocation7], 4
      %s144 = int_to_ptr.vmem [resolvable:$true] %s143
      %149 = dma.vmem_to_hbm [thread:$0]  %s144, 256, %s3, [#allocation4], 128, 128, 8
    $region25: #{tpu_custom_call.1} parent=1 // pred_fallthru
      _
    // Predicated region
    $region26: #{tpu_custom_call.1} parent=1 // pred_check
      _
    $region27: #{tpu_custom_call.1} parent=1 // pred_check_branch
      %151 = sbr.rel (0) target = $region29
    $region28: #{tpu_custom_call.1} parent=1 // pred_region
      %152 = dma.done [#allocation4], 256
    $region29: #{tpu_custom_call.1} parent=1 // pred_fallthru
      _
    %153 = vsyncpa [#allocation3], 1
    %154 = vsyncpa [#allocation6], 1
    %155 = vsyncpa [#allocation4], 1

</llo_original>
